<compile_context>
chip_gen: v6e
topology: v6e:2x2x1
jax: 0.10.0
libtpu: 0.0.40
codegen_flags: <defaults>
</compile_context>

<pallas_src>
import math

import jax
import jax.numpy as jnp
from jax import lax
from jax.experimental import pallas as pl
from jax.experimental.pallas import tpu as pltpu

MIB = 1024 * 1024


def _bilinear_matrix(in_size: int, out_size: int) -> jnp.ndarray:
    """f32 matrix M with y = M @ x: length in_size -> out_size, align_corners=True."""
    if out_size == 1 or in_size == 1:
        m = jnp.zeros((out_size, in_size), jnp.float32)
        return m.at[:, 0].set(1.0)
    out_idx = jnp.arange(out_size, dtype=jnp.float32)
    src = out_idx * (in_size - 1) / (out_size - 1)            # align_corners=True
    i0 = jnp.clip(jnp.floor(src).astype(jnp.int32), 0, in_size - 1)
    i1 = jnp.clip(i0 + 1, 0, in_size - 1)
    w1 = src - i0.astype(jnp.float32)
    w0 = 1.0 - w1
    oh0 = jax.nn.one_hot(i0, in_size, dtype=jnp.float32)
    oh1 = jax.nn.one_hot(i1, in_size, dtype=jnp.float32)
    return w0[:, None] * oh0 + w1[:, None] * oh1


def _round_up(x: int, m: int) -> int:
    return -(-x // m) * m


def _divisors(n: int):
    small, large = [], []
    i = 1
    while i * i <= n:
        if n % i == 0:
            small.append(i)
            if i != n // i:
                large.append(n // i)
        i += 1
    return small + large[::-1]


def _tpu_config():
    """(data_budget, vmem_limit, vmem_cap, min_grid_steps, mxu_k) for this chip."""
    vmem_cap = None
    try:
        vmem_cap = int(pltpu.get_tpu_info().vmem_capacity_bytes)
    except Exception:
        vmem_cap = None
    kind = ""
    try:
        kind = jax.devices()[0].device_kind.lower()
    except Exception:
        kind = ""
    if vmem_cap is None:
        # v5e / v6e have 128 MiB of VMEM; otherwise be conservative (v7x: 64 MiB).
        vmem_cap = 128 * MIB if ("v5" in kind or "v6" in kind) else 64 * MIB
    mxu_k = 128 if "v5" in kind else 256            # v5e MXU tiles are 128x128
    if vmem_cap <= 80 * MIB:                        # v7x-like: 64 MiB physical VMEM
        return 20 * MIB, 32 * MIB, vmem_cap, 4, mxu_k
    return 40 * MIB, 80 * MIB, vmem_cap, 4, mxu_k   # v5e / v6e: 128 MiB physical


def _pick_tile(nc: int, legal, fits, min_steps: int) -> int:
    """Largest divisor of nc that is BlockSpec-legal, fits the VMEM budget, and
    (when possible) keeps the grid at >= min_steps steps."""
    cands = [d for d in _divisors(nc) if legal(d)]
    if not cands:
        cands = [nc]                                # full-extent block is always legal
    fitting = [d for d in cands if fits(d)]
    if fitting:
        return max(fitting, key=lambda d: (min(nc // d, min_steps), d))
    return min(cands)                               # nothing fits: smallest legal block


def upsample_bilinear2d(x: jnp.ndarray, scale=2) -> jnp.ndarray:
    """x: (N, C, H, W) -> (N, C, floor(H*scale), floor(W*scale)), align_corners=True."""
    N, C, H, W = x.shape
    Ho, Wo = int(math.floor(H * scale)), int(math.floor(W * scale))
    NC, HW, HoWo = N * C, H * W, Ho * Wo

    itemsize = x.dtype.itemsize
    sub = max(8, 32 // itemsize)                    # sublane granularity (8 f32, 16 bf16)
    w_dtype = jnp.bfloat16 if x.dtype == jnp.bfloat16 else jnp.float32
    w_itemsize = jnp.dtype(w_dtype).itemsize
    sub_w = max(8, 32 // w_itemsize)

    budget, vmem_limit, vmem_cap, min_steps, mxu_k = _tpu_config()

    wh32 = _bilinear_matrix(H, Ho)                  # (Ho, H) in f32
    ww32 = _bilinear_matrix(W, Wo)                  # (Wo, W) in f32

    def compiler_params(limit):
        return pltpu.CompilerParams(
            dimension_semantics=("parallel",), vmem_limit_bytes=int(limit))

    # -------------------------------------------------- flat / lane-dense path
    kron_bytes = _round_up(HW, sub_w) * _round_up(HoWo, 128) * w_itemsize
    if Wo < 128 and 2 * kron_bytes <= min(8 * MIB, budget // 2):
        kflat = jnp.kron(wh32, ww32).T.astype(w_dtype)          # (H*W, Ho*Wo)

        in_row = _round_up(HW, 128) * itemsize                  # padded bytes / image
        out_row = _round_up(HoWo, 128) * itemsize
        max_rows = max(1, (budget - 2 * kron_bytes) // (2 * (in_row + out_row)))

        b_tile = _pick_tile(
            NC,
            legal=lambda d: d == NC or d % sub == 0,
            fits=lambda d: d <= max_rows,
            min_steps=min_steps)
        grid = (NC // b_tile,)

        usage = 2 * (b_tile * (in_row + out_row) + kron_bytes)
        limit = max(vmem_limit, min(usage + 4 * MIB, vmem_cap - 8 * MIB))

        def kernel(x_ref, k_ref, o_ref):
            # (b_tile, H*W) @ (H*W, Ho*Wo) -> (b_tile, Ho*Wo); all dims lane-dense.
            o_ref[...] = jnp.dot(
                x_ref[...], k_ref[...], preferred_element_type=jnp.float32
            ).astype(o_ref.dtype)

        cost = pl.CostEstimate(
            flops=2 * NC * HW * HoWo,
            transcendentals=0,
            bytes_accessed=NC * (HW + HoWo) * itemsize + HW * HoWo * w_itemsize)

        out2 = pl.pallas_call(
            kernel,
            out_shape=jax.ShapeDtypeStruct((NC, HoWo), x.dtype),
            grid_spec=pltpu.PrefetchScalarGridSpec(
                num_scalar_prefetch=0,
                grid=grid,
                in_specs=[
                    pl.BlockSpec((b_tile, HW), lambda i: (i, 0)),
                    pl.BlockSpec((HW, HoWo), lambda i: (0, 0)),
                ],
                out_specs=pl.BlockSpec((b_tile, HoWo), lambda i: (i, 0)),
            ),
            compiler_params=compiler_params(limit),
            cost_estimate=cost,
        )(x.reshape(NC, HW), kflat)
        return out2.reshape(N, C, Ho, Wo)

    # ---------------------------------------------------- two-matmul path
    # g = images fused per kron(I_g, Wh) matmul; g*H stays within one MXU K-tile.
    g = 1
    for cand in (16, 8, 4, 2):
        if NC % cand == 0 and cand * H <= mxu_k:
            g = cand
            break
    gh, gho = g * H, g * Ho

    whk = jnp.kron(jnp.eye(g, dtype=jnp.float32), wh32).astype(w_dtype)   # (g*Ho, g*H)
    wwt = ww32.T.astype(w_dtype)                                          # (W, Wo)

    in_img = H * _round_up(W, 128) * itemsize                  # padded bytes / image
    out_img = Ho * _round_up(Wo, 128) * itemsize
    weight_bytes = 2 * (_round_up(gho, sub_w) * _round_up(gh, 128) * w_itemsize
                        + _round_up(W, sub_w) * _round_up(Wo, 128) * w_itemsize)
    data_budget = max(0, budget - weight_bytes)
    max_images = max(1, data_budget // (2 * (in_img + out_img)))

    b_tile = _pick_tile(
        NC,
        legal=lambda d: d == NC or (d % g == 0
                                    and (d * H) % sub == 0
                                    and (d * Ho) % sub == 0),
        fits=lambda d: d <= max_images,
        min_steps=min_steps)
    groups = b_tile // g
    grid = (NC // b_tile,)

    usage = 2 * b_tile * (in_img + out_img) + weight_bytes
    limit = max(vmem_limit, min(usage + 4 * MIB, vmem_cap - 8 * MIB))

    def kernel(x_ref, whk_ref, wwt_ref, o_ref):
        # x_ref: (b_tile*H, W)  whk_ref: (g*Ho, g*H)  wwt_ref: (W, Wo)
        # o_ref: (b_tile*Ho, Wo)
        whk_v = whk_ref[...]
        wwt_v = wwt_ref[...]

        def mix(p, carry):
            src = pl.multiple_of(p * gh, gh)
            dst = pl.multiple_of(p * gho, gho)
            # W-mix: one dense matmul for g images' worth of rows.
            r = jnp.dot(x_ref[pl.ds(src, gh), :], wwt_v,
                        preferred_element_type=jnp.float32)               # (g*H, Wo)
            # Native single-pass bf16 MXU for the H-mix when the input is bf16.
            r = r.astype(whk_v.dtype)
            # H-mix: block-diagonal kron(I_g, Wh) applied as a single matmul.
            o_ref[pl.ds(dst, gho), :] = jnp.dot(
                whk_v, r, preferred_element_type=jnp.float32).astype(o_ref.dtype)
            return carry

        lax.fori_loop(0, groups, mix, 0, unroll=groups <= 16)

    cost = pl.CostEstimate(
        flops=2 * NC * H * W * Wo + 2 * NC * Ho * H * Wo,
        transcendentals=0,
        bytes_accessed=NC * (H * W + Ho * Wo) * itemsize
        + (gho * gh + W * Wo) * w_itemsize)

    out2 = pl.pallas_call(
        kernel,
        out_shape=jax.ShapeDtypeStruct((NC * Ho, Wo), x.dtype),
        grid_spec=pltpu.PrefetchScalarGridSpec(
            num_scalar_prefetch=0,
            grid=grid,
            in_specs=[
                pl.BlockSpec((b_tile * H, W), lambda i: (i, 0)),
                pl.BlockSpec((gho, gh), lambda i: (0, 0)),
                pl.BlockSpec((W, Wo), lambda i: (0, 0)),
            ],
            out_specs=pl.BlockSpec((b_tile * Ho, Wo), lambda i: (i, 0)),
        ),
        compiler_params=compiler_params(limit),
        cost_estimate=cost,
    )(x.reshape(NC * H, W), whk, wwt)
    return out2.reshape(N, C, Ho, Wo)


def _ref_upsample(x, scale=2):
    """Pure-JAX reference: bilinear, align_corners=True."""
    N, C, H, W = x.shape
    Ho, Wo = int(math.floor(H * scale)), int(math.floor(W * scale))
    wh = _bilinear_matrix(H, Ho)
    ww = _bilinear_matrix(W, Wo)
    return jnp.einsum("oh,nchw,pw->ncop", wh, x, ww,
                      precision=lax.Precision.HIGHEST)


if __name__ == "__main__":
    up = jax.jit(upsample_bilinear2d, static_argnames=("scale",))

    key = jax.random.PRNGKey(0)
    k1, k2, k3 = jax.random.split(key, 3)

    # Primary shape from the module spec (small image -> lane-dense flat path).
    x = jax.random.normal(k1, (2, 4, 16, 16), dtype=jnp.float32)
    y = up(x, scale=2)
    jax.block_until_ready(y)
    assert y.shape == (2, 4, 32, 32), y.shape
    assert y.dtype == x.dtype
    assert jnp.allclose(y, _ref_upsample(x, 2), atol=1e-4, rtol=1e-4)

    # Larger batch: multi-block "parallel" grid on the flat path.
    x2 = jax.random.normal(k2, (4, 32, 16, 16), dtype=jnp.float32)
    y2 = up(x2, scale=2)
    jax.block_until_ready(y2)
    assert y2.shape == (4, 32, 32, 32), y2.shape
    assert jnp.allclose(y2, _ref_upsample(x2, 2), atol=1e-4, rtol=1e-4)

    # Wide image (Wo >= 128): exercises the two-matmul path.
    x3 = jax.random.normal(k3, (1, 2, 8, 128), dtype=jnp.float32)
    y3 = up(x3, scale=2)
    jax.block_until_ready(y3)
    assert y3.shape == (1, 2, 16, 256), y3.shape
    assert jnp.allclose(y3, _ref_upsample(x3, 2), atol=1e-4, rtol=1e-4)

    print("KERNEL_OK")
</pallas_src>

<mosaic_0001>
module attributes {stable_mosaic.version = 11 : i64} {
  func.func @kernel(%arg0: i32, %arg1: memref<8x256xf32, #tpu.memory_space<vmem>>, %arg2: memref<256x1024xf32, #tpu.memory_space<vmem>>, %arg3: memref<8x1024xf32, #tpu.memory_space<vmem>>) attributes {dimension_semantics = [#tpu.dimension_semantics<parallel>], iteration_bounds = array<i64: 1>, scalar_prefetch = 0 : i64, scratch_operands = 0 : i64, tpu.core_type = #tpu.core_type<tc>, window_params = [{transform_indices = @transform_0, window_bounds = array<i64: 8, 256>}, {pipeline_mode = #tpu.pipeline_mode<synchronous>, transform_indices = @transform_1, window_bounds = array<i64: 256, 1024>}, {transform_indices = @transform_2, window_bounds = array<i64: 8, 1024>}]} {
    %c0 = arith.constant 0 : index
    %c0_0 = arith.constant 0 : index
    %0 = vector.load %arg1[%c0, %c0_0] : memref<8x256xf32, #tpu.memory_space<vmem>>, vector<8x256xf32>
    %c0_1 = arith.constant 0 : index
    %c0_2 = arith.constant 0 : index
    %1 = vector.load %arg2[%c0_1, %c0_2] : memref<256x1024xf32, #tpu.memory_space<vmem>>, vector<256x1024xf32>
    %cst = arith.constant dense<0.000000e+00> : vector<8x1024xf32>
    %2 = tpu.matmul %0, %1, %cst {dimension_numbers = #tpu.dot_dimension_numbers<[1], [0], [0], [1], [0, 0, 1, 1], [], []>} : vector<8x256xf32>, vector<256x1024xf32>, vector<8x1024xf32> -> vector<8x1024xf32>
    %c0_3 = arith.constant 0 : index
    %c0_4 = arith.constant 0 : index
    %3 = vector.load %arg3[%c0_3, %c0_4] : memref<8x1024xf32, #tpu.memory_space<vmem>>, vector<8x1024xf32>
    tpu.vector_store %arg3[%c0_3, %c0_4], %2 {strides = array<i32>} : memref<8x1024xf32, #tpu.memory_space<vmem>>, vector<8x1024xf32>,
    return
  }
  func.func @transform_0(%arg0: i32) -> (i32, i32) {
    %c0_i32 = arith.constant 0 : i32
    %c0_i32_0 = arith.constant 0 : i32
    return %arg0, %c0_i32 : i32, i32
  }
  func.func @transform_1(%arg0: i32) -> (i32, i32) {
    %c0_i32 = arith.constant 0 : i32
    %c0_i32_0 = arith.constant 0 : i32
    %c0_i32_1 = arith.constant 0 : i32
    return %c0_i32, %c0_i32_0 : i32, i32
  }
  func.func @transform_2(%arg0: i32) -> (i32, i32) {
    %c0_i32 = arith.constant 0 : i32
    %c0_i32_0 = arith.constant 0 : i32
    return %arg0, %c0_i32 : i32, i32
  }
}

</mosaic_0001>

<llo_original>
// kernel: upsample_bilinear2d.1
$region0: #{upsample_bilinear2d.1}
  #allocation0 [shape = 'u32[]', space=smem, size = 0x4, offset = 0x4, fixed_abs, tag = 'smem constant byte address 0x4 - core index']
  #allocation1 [shape = 'u32[144,128]{1,0:T(1,128)}', space=vmem, size = 0x12000, scoped, tag = 'internal scratch']
  %s0 = inlined_call_operand.vmem [shape: f32[8,256], index: 0, kind: input, shape index: {}]
  %s1 = inlined_call_operand.vmem [shape: f32[256,1024], index: 1, kind: input, shape index: {}]
  %s2 = inlined_call_operand.vmem [shape: f32[8,1024], index: 2, kind: output, shape index: {}]
  %s3 = sld [smem:[#allocation0]]
  $region18: #{upsample_bilinear2d.1} parent=0
    _
  %s5 = ssub.s32 1, %s3
  %s6 = scalar_select 0, %s5, %s3
  // Predicated region
  $region2: #{upsample_bilinear2d.1} parent=0 // pred_check
    _
  $region3: #{upsample_bilinear2d.1} parent=0 // pred_check_branch
    %8 = sbr.rel (0) target = $region5
  $region4: #{upsample_bilinear2d.1} parent=0 // pred_region
    _
  $region5: #{upsample_bilinear2d.1} parent=0 // pred_fallthru
    _
  // Predicated region
  $region6: #{upsample_bilinear2d.1} parent=0 // pred_check
    _
  $region7: #{upsample_bilinear2d.1} parent=0 // pred_check_branch
    %10 = sbr.rel (0) target = $region9
  $region8: #{upsample_bilinear2d.1} parent=0 // pred_region
    _
  $region9: #{upsample_bilinear2d.1} parent=0 // pred_fallthru
    _
  %v11 = vld [vmem:[%s0] sm:$0xff]
  %v12 = vld [vmem:[%s0 + $0x8] sm:$0xff]
  %v13 = vld [vmem:[%s1] sm:$0xff]
  %v14 = vld [vmem:[%s1 + $0x8] sm:$0xff]
  %v15 = vld [vmem:[%s1 + $0x10] sm:$0xff]
  %v16 = vld [vmem:[%s1 + $0x18] sm:$0xff]
  %v17 = vld [vmem:[%s1 + $0x20] sm:$0xff]
  %v18 = vld [vmem:[%s1 + $0x28] sm:$0xff]
  %v19 = vld [vmem:[%s1 + $0x30] sm:$0xff]
  %v20 = vld [vmem:[%s1 + $0x38] sm:$0xff]
  %v21 = vld [vmem:[%s1 + $0x40] sm:$0xff]
  %v22 = vld [vmem:[%s1 + $0x48] sm:$0xff]
  %v23 = vld [vmem:[%s1 + $0x50] sm:$0xff]
  %v24 = vld [vmem:[%s1 + $0x58] sm:$0xff]
  %v25 = vld [vmem:[%s1 + $0x60] sm:$0xff]
  %v26 = vld [vmem:[%s1 + $0x68] sm:$0xff]
  %v27 = vld [vmem:[%s1 + $0x70] sm:$0xff]
  %v28 = vld [vmem:[%s1 + $0x78] sm:$0xff]
  %v29 = vld [vmem:[%s1 + $0x80] sm:$0xff]
  %v30 = vld [vmem:[%s1 + $0x88] sm:$0xff]
  %v31 = vld [vmem:[%s1 + $0x90] sm:$0xff]
  %v32 = vld [vmem:[%s1 + $0x98] sm:$0xff]
  %v33 = vld [vmem:[%s1 + $0xa0] sm:$0xff]
  %v34 = vld [vmem:[%s1 + $0xa8] sm:$0xff]
  %v35 = vld [vmem:[%s1 + $0xb0] sm:$0xff]
  %v36 = vld [vmem:[%s1 + $0xb8] sm:$0xff]
  %v37 = vld [vmem:[%s1 + $0xc0] sm:$0xff]
  %v38 = vld [vmem:[%s1 + $0xc8] sm:$0xff]
  %v39 = vld [vmem:[%s1 + $0xd0] sm:$0xff]
  %v40 = vld [vmem:[%s1 + $0xd8] sm:$0xff]
  %v41 = vld [vmem:[%s1 + $0xe0] sm:$0xff]
  %v42 = vld [vmem:[%s1 + $0xe8] sm:$0xff]
  %v43 = vld [vmem:[%s1 + $0xf0] sm:$0xff]
  %v44 = vld [vmem:[%s1 + $0xf8] sm:$0xff]
  %v45 = vld [vmem:[%s1 + $0x100] sm:$0xff]
  %v46 = vld [vmem:[%s1 + $0x108] sm:$0xff]
  %v47 = vld [vmem:[%s1 + $0x110] sm:$0xff]
  %v48 = vld [vmem:[%s1 + $0x118] sm:$0xff]
  %v49 = vld [vmem:[%s1 + $0x120] sm:$0xff]
  %v50 = vld [vmem:[%s1 + $0x128] sm:$0xff]
  %v51 = vld [vmem:[%s1 + $0x130] sm:$0xff]
  %v52 = vld [vmem:[%s1 + $0x138] sm:$0xff]
  %v53 = vld [vmem:[%s1 + $0x140] sm:$0xff]
  %v54 = vld [vmem:[%s1 + $0x148] sm:$0xff]
  %v55 = vld [vmem:[%s1 + $0x150] sm:$0xff]
  %v56 = vld [vmem:[%s1 + $0x158] sm:$0xff]
  %v57 = vld [vmem:[%s1 + $0x160] sm:$0xff]
  %v58 = vld [vmem:[%s1 + $0x168] sm:$0xff]
  %v59 = vld [vmem:[%s1 + $0x170] sm:$0xff]
  %v60 = vld [vmem:[%s1 + $0x178] sm:$0xff]
  %v61 = vld [vmem:[%s1 + $0x180] sm:$0xff]
  %v62 = vld [vmem:[%s1 + $0x188] sm:$0xff]
  %v63 = vld [vmem:[%s1 + $0x190] sm:$0xff]
  %v64 = vld [vmem:[%s1 + $0x198] sm:$0xff]
  %v65 = vld [vmem:[%s1 + $0x1a0] sm:$0xff]
  %v66 = vld [vmem:[%s1 + $0x1a8] sm:$0xff]
  %v67 = vld [vmem:[%s1 + $0x1b0] sm:$0xff]
  %v68 = vld [vmem:[%s1 + $0x1b8] sm:$0xff]
  %v69 = vld [vmem:[%s1 + $0x1c0] sm:$0xff]
  %v70 = vld [vmem:[%s1 + $0x1c8] sm:$0xff]
  %v71 = vld [vmem:[%s1 + $0x1d0] sm:$0xff]
  %v72 = vld [vmem:[%s1 + $0x1d8] sm:$0xff]
  %v73 = vld [vmem:[%s1 + $0x1e0] sm:$0xff]
  %v74 = vld [vmem:[%s1 + $0x1e8] sm:$0xff]
  %v75 = vld [vmem:[%s1 + $0x1f0] sm:$0xff]
  %v76 = vld [vmem:[%s1 + $0x1f8] sm:$0xff]
  %v77 = vld [vmem:[%s1 + $0x200] sm:$0xff]
  %v78 = vld [vmem:[%s1 + $0x208] sm:$0xff]
  %v79 = vld [vmem:[%s1 + $0x210] sm:$0xff]
  %v80 = vld [vmem:[%s1 + $0x218] sm:$0xff]
  %v81 = vld [vmem:[%s1 + $0x220] sm:$0xff]
  %v82 = vld [vmem:[%s1 + $0x228] sm:$0xff]
  %v83 = vld [vmem:[%s1 + $0x230] sm:$0xff]
  %v84 = vld [vmem:[%s1 + $0x238] sm:$0xff]
  %v85 = vld [vmem:[%s1 + $0x240] sm:$0xff]
  %v86 = vld [vmem:[%s1 + $0x248] sm:$0xff]
  %v87 = vld [vmem:[%s1 + $0x250] sm:$0xff]
  %v88 = vld [vmem:[%s1 + $0x258] sm:$0xff]
  %v89 = vld [vmem:[%s1 + $0x260] sm:$0xff]
  %v90 = vld [vmem:[%s1 + $0x268] sm:$0xff]
  %v91 = vld [vmem:[%s1 + $0x270] sm:$0xff]
  %v92 = vld [vmem:[%s1 + $0x278] sm:$0xff]
  %v93 = vld [vmem:[%s1 + $0x280] sm:$0xff]
  %v94 = vld [vmem:[%s1 + $0x288] sm:$0xff]
  %v95 = vld [vmem:[%s1 + $0x290] sm:$0xff]
  %v96 = vld [vmem:[%s1 + $0x298] sm:$0xff]
  %v97 = vld [vmem:[%s1 + $0x2a0] sm:$0xff]
  %v98 = vld [vmem:[%s1 + $0x2a8] sm:$0xff]
  %v99 = vld [vmem:[%s1 + $0x2b0] sm:$0xff]
  %v100 = vld [vmem:[%s1 + $0x2b8] sm:$0xff]
  %v101 = vld [vmem:[%s1 + $0x2c0] sm:$0xff]
  %v102 = vld [vmem:[%s1 + $0x2c8] sm:$0xff]
  %v103 = vld [vmem:[%s1 + $0x2d0] sm:$0xff]
  %v104 = vld [vmem:[%s1 + $0x2d8] sm:$0xff]
  %v105 = vld [vmem:[%s1 + $0x2e0] sm:$0xff]
  %v106 = vld [vmem:[%s1 + $0x2e8] sm:$0xff]
  %v107 = vld [vmem:[%s1 + $0x2f0] sm:$0xff]
  %v108 = vld [vmem:[%s1 + $0x2f8] sm:$0xff]
  %v109 = vld [vmem:[%s1 + $0x300] sm:$0xff]
  %v110 = vld [vmem:[%s1 + $0x308] sm:$0xff]
  %v111 = vld [vmem:[%s1 + $0x310] sm:$0xff]
  %v112 = vld [vmem:[%s1 + $0x318] sm:$0xff]
  %v113 = vld [vmem:[%s1 + $0x320] sm:$0xff]
  %v114 = vld [vmem:[%s1 + $0x328] sm:$0xff]
  %v115 = vld [vmem:[%s1 + $0x330] sm:$0xff]
  %v116 = vld [vmem:[%s1 + $0x338] sm:$0xff]
  %v117 = vld [vmem:[%s1 + $0x340] sm:$0xff]
  %v118 = vld [vmem:[%s1 + $0x348] sm:$0xff]
  %v119 = vld [vmem:[%s1 + $0x350] sm:$0xff]
  %v120 = vld [vmem:[%s1 + $0x358] sm:$0xff]
  %v121 = vld [vmem:[%s1 + $0x360] sm:$0xff]
  %v122 = vld [vmem:[%s1 + $0x368] sm:$0xff]
  %v123 = vld [vmem:[%s1 + $0x370] sm:$0xff]
  %v124 = vld [vmem:[%s1 + $0x378] sm:$0xff]
  %v125 = vld [vmem:[%s1 + $0x380] sm:$0xff]
  %v126 = vld [vmem:[%s1 + $0x388] sm:$0xff]
  %v127 = vld [vmem:[%s1 + $0x390] sm:$0xff]
  %v128 = vld [vmem:[%s1 + $0x398] sm:$0xff]
  %v129 = vld [vmem:[%s1 + $0x3a0] sm:$0xff]
  %v130 = vld [vmem:[%s1 + $0x3a8] sm:$0xff]
  %v131 = vld [vmem:[%s1 + $0x3b0] sm:$0xff]
  %v132 = vld [vmem:[%s1 + $0x3b8] sm:$0xff]
  %v133 = vld [vmem:[%s1 + $0x3c0] sm:$0xff]
  %v134 = vld [vmem:[%s1 + $0x3c8] sm:$0xff]
  %v135 = vld [vmem:[%s1 + $0x3d0] sm:$0xff]
  %v136 = vld [vmem:[%s1 + $0x3d8] sm:$0xff]
  %v137 = vld [vmem:[%s1 + $0x3e0] sm:$0xff]
  %v138 = vld [vmem:[%s1 + $0x3e8] sm:$0xff]
  %v139 = vld [vmem:[%s1 + $0x3f0] sm:$0xff]
  %v140 = vld [vmem:[%s1 + $0x3f8] sm:$0xff]
  %v141 = vld [vmem:[%s1 + $0x400] sm:$0xff]
  %v142 = vld [vmem:[%s1 + $0x408] sm:$0xff]
  %v143 = vld [vmem:[%s1 + $0x410] sm:$0xff]
  %v144 = vld [vmem:[%s1 + $0x418] sm:$0xff]
  %v145 = vld [vmem:[%s1 + $0x420] sm:$0xff]
  %v146 = vld [vmem:[%s1 + $0x428] sm:$0xff]
  %v147 = vld [vmem:[%s1 + $0x430] sm:$0xff]
  %v148 = vld [vmem:[%s1 + $0x438] sm:$0xff]
  %v149 = vld [vmem:[%s1 + $0x440] sm:$0xff]
  %v150 = vld [vmem:[%s1 + $0x448] sm:$0xff]
  %v151 = vld [vmem:[%s1 + $0x450] sm:$0xff]
  %v152 = vld [vmem:[%s1 + $0x458] sm:$0xff]
  %v153 = vld [vmem:[%s1 + $0x460] sm:$0xff]
  %v154 = vld [vmem:[%s1 + $0x468] sm:$0xff]
  %v155 = vld [vmem:[%s1 + $0x470] sm:$0xff]
  %v156 = vld [vmem:[%s1 + $0x478] sm:$0xff]
  %v157 = vld [vmem:[%s1 + $0x480] sm:$0xff]
  %v158 = vld [vmem:[%s1 + $0x488] sm:$0xff]
  %v159 = vld [vmem:[%s1 + $0x490] sm:$0xff]
  %v160 = vld [vmem:[%s1 + $0x498] sm:$0xff]
  %v161 = vld [vmem:[%s1 + $0x4a0] sm:$0xff]
  %v162 = vld [vmem:[%s1 + $0x4a8] sm:$0xff]
  %v163 = vld [vmem:[%s1 + $0x4b0] sm:$0xff]
  %v164 = vld [vmem:[%s1 + $0x4b8] sm:$0xff]
  %v165 = vld [vmem:[%s1 + $0x4c0] sm:$0xff]
  %v166 = vld [vmem:[%s1 + $0x4c8] sm:$0xff]
  %v167 = vld [vmem:[%s1 + $0x4d0] sm:$0xff]
  %v168 = vld [vmem:[%s1 + $0x4d8] sm:$0xff]
  %v169 = vld [vmem:[%s1 + $0x4e0] sm:$0xff]
  %v170 = vld [vmem:[%s1 + $0x4e8] sm:$0xff]
  %v171 = vld [vmem:[%s1 + $0x4f0] sm:$0xff]
  %v172 = vld [vmem:[%s1 + $0x4f8] sm:$0xff]
  %v173 = vld [vmem:[%s1 + $0x500] sm:$0xff]
  %v174 = vld [vmem:[%s1 + $0x508] sm:$0xff]
  %v175 = vld [vmem:[%s1 + $0x510] sm:$0xff]
  %v176 = vld [vmem:[%s1 + $0x518] sm:$0xff]
  %v177 = vld [vmem:[%s1 + $0x520] sm:$0xff]
  %v178 = vld [vmem:[%s1 + $0x528] sm:$0xff]
  %v179 = vld [vmem:[%s1 + $0x530] sm:$0xff]
  %v180 = vld [vmem:[%s1 + $0x538] sm:$0xff]
  %v181 = vld [vmem:[%s1 + $0x540] sm:$0xff]
  %v182 = vld [vmem:[%s1 + $0x548] sm:$0xff]
  %v183 = vld [vmem:[%s1 + $0x550] sm:$0xff]
  %v184 = vld [vmem:[%s1 + $0x558] sm:$0xff]
  %v185 = vld [vmem:[%s1 + $0x560] sm:$0xff]
  %v186 = vld [vmem:[%s1 + $0x568] sm:$0xff]
  %v187 = vld [vmem:[%s1 + $0x570] sm:$0xff]
  %v188 = vld [vmem:[%s1 + $0x578] sm:$0xff]
  %v189 = vld [vmem:[%s1 + $0x580] sm:$0xff]
  %v190 = vld [vmem:[%s1 + $0x588] sm:$0xff]
  %v191 = vld [vmem:[%s1 + $0x590] sm:$0xff]
  %v192 = vld [vmem:[%s1 + $0x598] sm:$0xff]
  %v193 = vld [vmem:[%s1 + $0x5a0] sm:$0xff]
  %v194 = vld [vmem:[%s1 + $0x5a8] sm:$0xff]
  %v195 = vld [vmem:[%s1 + $0x5b0] sm:$0xff]
  %v196 = vld [vmem:[%s1 + $0x5b8] sm:$0xff]
  %v197 = vld [vmem:[%s1 + $0x5c0] sm:$0xff]
  %v198 = vld [vmem:[%s1 + $0x5c8] sm:$0xff]
  %v199 = vld [vmem:[%s1 + $0x5d0] sm:$0xff]
  %v200 = vld [vmem:[%s1 + $0x5d8] sm:$0xff]
  %v201 = vld [vmem:[%s1 + $0x5e0] sm:$0xff]
  %v202 = vld [vmem:[%s1 + $0x5e8] sm:$0xff]
  %v203 = vld [vmem:[%s1 + $0x5f0] sm:$0xff]
  %v204 = vld [vmem:[%s1 + $0x5f8] sm:$0xff]
  %v205 = vld [vmem:[%s1 + $0x600] sm:$0xff]
  %v206 = vld [vmem:[%s1 + $0x608] sm:$0xff]
  %v207 = vld [vmem:[%s1 + $0x610] sm:$0xff]
  %v208 = vld [vmem:[%s1 + $0x618] sm:$0xff]
  %v209 = vld [vmem:[%s1 + $0x620] sm:$0xff]
  %v210 = vld [vmem:[%s1 + $0x628] sm:$0xff]
  %v211 = vld [vmem:[%s1 + $0x630] sm:$0xff]
  %v212 = vld [vmem:[%s1 + $0x638] sm:$0xff]
  %v213 = vld [vmem:[%s1 + $0x640] sm:$0xff]
  %v214 = vld [vmem:[%s1 + $0x648] sm:$0xff]
  %v215 = vld [vmem:[%s1 + $0x650] sm:$0xff]
  %v216 = vld [vmem:[%s1 + $0x658] sm:$0xff]
  %v217 = vld [vmem:[%s1 + $0x660] sm:$0xff]
  %v218 = vld [vmem:[%s1 + $0x668] sm:$0xff]
  %v219 = vld [vmem:[%s1 + $0x670] sm:$0xff]
  %v220 = vld [vmem:[%s1 + $0x678] sm:$0xff]
  %v221 = vld [vmem:[%s1 + $0x680] sm:$0xff]
  %v222 = vld [vmem:[%s1 + $0x688] sm:$0xff]
  %v223 = vld [vmem:[%s1 + $0x690] sm:$0xff]
  %v224 = vld [vmem:[%s1 + $0x698] sm:$0xff]
  %v225 = vld [vmem:[%s1 + $0x6a0] sm:$0xff]
  %v226 = vld [vmem:[%s1 + $0x6a8] sm:$0xff]
  %v227 = vld [vmem:[%s1 + $0x6b0] sm:$0xff]
  %v228 = vld [vmem:[%s1 + $0x6b8] sm:$0xff]
  %v229 = vld [vmem:[%s1 + $0x6c0] sm:$0xff]
  %v230 = vld [vmem:[%s1 + $0x6c8] sm:$0xff]
  %v231 = vld [vmem:[%s1 + $0x6d0] sm:$0xff]
  %v232 = vld [vmem:[%s1 + $0x6d8] sm:$0xff]
  %v233 = vld [vmem:[%s1 + $0x6e0] sm:$0xff]
  %v234 = vld [vmem:[%s1 + $0x6e8] sm:$0xff]
  %v235 = vld [vmem:[%s1 + $0x6f0] sm:$0xff]
  %v236 = vld [vmem:[%s1 + $0x6f8] sm:$0xff]
  %v237 = vld [vmem:[%s1 + $0x700] sm:$0xff]
  %v238 = vld [vmem:[%s1 + $0x708] sm:$0xff]
  %v239 = vld [vmem:[%s1 + $0x710] sm:$0xff]
  %v240 = vld [vmem:[%s1 + $0x718] sm:$0xff]
  %v241 = vld [vmem:[%s1 + $0x720] sm:$0xff]
  %v242 = vld [vmem:[%s1 + $0x728] sm:$0xff]
  %v243 = vld [vmem:[%s1 + $0x730] sm:$0xff]
  %v244 = vld [vmem:[%s1 + $0x738] sm:$0xff]
  %v245 = vld [vmem:[%s1 + $0x740] sm:$0xff]
  %v246 = vld [vmem:[%s1 + $0x748] sm:$0xff]
  %v247 = vld [vmem:[%s1 + $0x750] sm:$0xff]
  %v248 = vld [vmem:[%s1 + $0x758] sm:$0xff]
  %v249 = vld [vmem:[%s1 + $0x760] sm:$0xff]
  %v250 = vld [vmem:[%s1 + $0x768] sm:$0xff]
  %v251 = vld [vmem:[%s1 + $0x770] sm:$0xff]
  %v252 = vld [vmem:[%s1 + $0x778] sm:$0xff]
  %v253 = vld [vmem:[%s1 + $0x780] sm:$0xff]
  %v254 = vld [vmem:[%s1 + $0x788] sm:$0xff]
  %v255 = vld [vmem:[%s1 + $0x790] sm:$0xff]
  %v256 = vld [vmem:[%s1 + $0x798] sm:$0xff]
  %v257 = vld [vmem:[%s1 + $0x7a0] sm:$0xff]
  %v258 = vld [vmem:[%s1 + $0x7a8] sm:$0xff]
  %v259 = vld [vmem:[%s1 + $0x7b0] sm:$0xff]
  %v260 = vld [vmem:[%s1 + $0x7b8] sm:$0xff]
  %v261 = vld [vmem:[%s1 + $0x7c0] sm:$0xff]
  %v262 = vld [vmem:[%s1 + $0x7c8] sm:$0xff]
  %v263 = vld [vmem:[%s1 + $0x7d0] sm:$0xff]
  %v264 = vld [vmem:[%s1 + $0x7d8] sm:$0xff]
  %v265 = vld [vmem:[%s1 + $0x7e0] sm:$0xff]
  %v266 = vld [vmem:[%s1 + $0x7e8] sm:$0xff]
  %v267 = vld [vmem:[%s1 + $0x7f0] sm:$0xff]
  %v268 = vld [vmem:[%s1 + $0x7f8] sm:$0xff]
  %269 = vmatprep.subr.mxu0 %v134
  %270 = vmatpush1.msra.mxu0 %v133
  %271 = vmatprep.subr.mxu0 %v126
  %272 = vmatpush1.msra.mxu0 %v125
  %273 = vmatprep.subr.mxu0 %v118
  %274 = vmatpush1.msra.mxu0 %v117
  %275 = vmatprep.subr.mxu0 %v110
  %276 = vmatpush1.msra.mxu0 %v109
  %277 = vmatprep.subr.mxu0 %v102
  %278 = vmatpush1.msra.mxu0 %v101
  %279 = vmatprep.subr.mxu0 %v94
  %280 = vmatpush1.msra.mxu0 %v93
  %281 = vmatprep.subr.mxu0 %v86
  %282 = vmatpush1.msra.mxu0 %v85
  %283 = vmatprep.subr.mxu0 %v78
  %284 = vmatpush1.msra.mxu0 %v77
  %285 = vmatprep.subr.mxu0 %v70
  %286 = vmatpush1.msra.mxu0 %v69
  %287 = vmatprep.subr.mxu0 %v62
  %288 = vmatpush1.msra.mxu0 %v61
  %289 = vmatprep.subr.mxu0 %v54
  %290 = vmatpush1.msra.mxu0 %v53
  %291 = vmatprep.subr.mxu0 %v46
  %292 = vmatpush1.msra.mxu0 %v45
  %293 = vmatprep.subr.mxu0 %v38
  %294 = vmatpush1.msra.mxu0 %v37
  %295 = vmatprep.subr.mxu0 %v30
  %296 = vmatpush1.msra.mxu0 %v29
  %297 = vmatprep.subr.mxu0 %v22
  %298 = vmatpush1.msra.mxu0 %v21
  %299 = vmatprep.subr.mxu0 %v14
  %300 = vmatpush1.msra.mxu0 %v13
  %301 = vmatprep.subr.mxu0 %v262
  %302 = vmatpush2.msra.mxu0 %v261
  %303 = vmatprep.subr.mxu0 %v254
  %304 = vmatpush2.msra.mxu0 %v253
  %305 = vmatprep.subr.mxu0 %v246
  %306 = vmatpush2.msra.mxu0 %v245
  %307 = vmatprep.subr.mxu0 %v238
  %308 = vmatpush2.msra.mxu0 %v237
  %309 = vmatprep.subr.mxu0 %v230
  %310 = vmatpush2.msra.mxu0 %v229
  %311 = vmatprep.subr.mxu0 %v222
  %312 = vmatpush2.msra.mxu0 %v221
  %313 = vmatprep.subr.mxu0 %v214
  %314 = vmatpush2.msra.mxu0 %v213
  %315 = vmatprep.subr.mxu0 %v206
  %316 = vmatpush2.msra.mxu0 %v205
  %317 = vmatprep.subr.mxu0 %v198
  %318 = vmatpush2.msra.mxu0 %v197
  %319 = vmatprep.subr.mxu0 %v190
  %320 = vmatpush2.msra.mxu0 %v189
  %321 = vmatprep.subr.mxu0 %v182
  %322 = vmatpush2.msra.mxu0 %v181
  %323 = vmatprep.subr.mxu0 %v174
  %324 = vmatpush2.msra.mxu0 %v173
  %325 = vmatprep.subr.mxu0 %v166
  %326 = vmatpush2.msra.mxu0 %v165
  %327 = vmatprep.subr.mxu0 %v158
  %328 = vmatpush2.msra.mxu0 %v157
  %329 = vmatprep.subr.mxu0 %v150
  %330 = vmatpush2.msra.mxu0 %v149
  %331 = vmatprep.subr.mxu0 %v142
  %332 = vmatpush2.msra.mxu0 %v141
  %333 = vmatprep.mubr.f32.mxu0 %v12
  %334 = vmatmul.mubr.f32.gmra.mxu0 %v11
  %v335 = vpop.f32.mrf.mxu0
  %v336 = vadd.f32 0.0, %v335
  %v337 = vpop.f32.mrf.mxu0
  %v338 = vadd.f32 0.0, %v337
  %339 = vdwg.mxu0
  %340 = vmatprep.subr.mxu0 %v136
  %341 = vmatpush1.msra.mxu0 %v135
  %342 = vmatprep.subr.mxu0 %v128
  %343 = vmatpush1.msra.mxu0 %v127
  %344 = vmatprep.subr.mxu0 %v120
  %345 = vmatpush1.msra.mxu0 %v119
  %346 = vmatprep.subr.mxu0 %v112
  %347 = vmatpush1.msra.mxu0 %v111
  %348 = vmatprep.subr.mxu0 %v104
  %349 = vmatpush1.msra.mxu0 %v103
  %350 = vmatprep.subr.mxu0 %v96
  %351 = vmatpush1.msra.mxu0 %v95
  %352 = vmatprep.subr.mxu0 %v88
  %353 = vmatpush1.msra.mxu0 %v87
  %354 = vmatprep.subr.mxu0 %v80
  %355 = vmatpush1.msra.mxu0 %v79
  %356 = vmatprep.subr.mxu0 %v72
  %357 = vmatpush1.msra.mxu0 %v71
  %358 = vmatprep.subr.mxu0 %v64
  %359 = vmatpush1.msra.mxu0 %v63
  %360 = vmatprep.subr.mxu0 %v56
  %361 = vmatpush1.msra.mxu0 %v55
  %362 = vmatprep.subr.mxu0 %v48
  %363 = vmatpush1.msra.mxu0 %v47
  %364 = vmatprep.subr.mxu0 %v40
  %365 = vmatpush1.msra.mxu0 %v39
  %366 = vmatprep.subr.mxu0 %v32
  %367 = vmatpush1.msra.mxu0 %v31
  %368 = vmatprep.subr.mxu0 %v24
  %369 = vmatpush1.msra.mxu0 %v23
  %370 = vmatprep.subr.mxu0 %v16
  %371 = vmatpush1.msra.mxu0 %v15
  %372 = vmatprep.subr.mxu0 %v264
  %373 = vmatpush2.msra.mxu0 %v263
  %374 = vmatprep.subr.mxu0 %v256
  %375 = vmatpush2.msra.mxu0 %v255
  %376 = vmatprep.subr.mxu0 %v248
  %377 = vmatpush2.msra.mxu0 %v247
  %378 = vmatprep.subr.mxu0 %v240
  %379 = vmatpush2.msra.mxu0 %v239
  %380 = vmatprep.subr.mxu0 %v232
  %381 = vmatpush2.msra.mxu0 %v231
  %382 = vmatprep.subr.mxu0 %v224
  %383 = vmatpush2.msra.mxu0 %v223
  %384 = vmatprep.subr.mxu0 %v216
  %385 = vmatpush2.msra.mxu0 %v215
  %386 = vmatprep.subr.mxu0 %v208
  %387 = vmatpush2.msra.mxu0 %v207
  %388 = vmatprep.subr.mxu0 %v200
  %389 = vmatpush2.msra.mxu0 %v199
  %390 = vmatprep.subr.mxu0 %v192
  %391 = vmatpush2.msra.mxu0 %v191
  %392 = vmatprep.subr.mxu0 %v184
  %393 = vmatpush2.msra.mxu0 %v183
  %394 = vmatprep.subr.mxu0 %v176
  %395 = vmatpush2.msra.mxu0 %v175
  %396 = vmatprep.subr.mxu0 %v168
  %397 = vmatpush2.msra.mxu0 %v167
  %398 = vmatprep.subr.mxu0 %v160
  %399 = vmatpush2.msra.mxu0 %v159
  %400 = vmatprep.subr.mxu0 %v152
  %401 = vmatpush2.msra.mxu0 %v151
  %402 = vmatprep.subr.mxu0 %v144
  %403 = vmatpush2.msra.mxu0 %v143
  %404 = vmatprep.mubr.f32.mxu0 %v12
  %405 = vmatmul.mubr.f32.gmra.mxu0 %v11
  %v406 = vpop.f32.mrf.mxu0
  %v407 = vadd.f32 0.0, %v406
  %v408 = vpop.f32.mrf.mxu0
  %v409 = vadd.f32 0.0, %v408
  %410 = vdwg.mxu0
  %411 = vmatprep.subr.mxu0 %v138
  %412 = vmatpush1.msra.mxu0 %v137
  %413 = vmatprep.subr.mxu0 %v130
  %414 = vmatpush1.msra.mxu0 %v129
  %415 = vmatprep.subr.mxu0 %v122
  %416 = vmatpush1.msra.mxu0 %v121
  %417 = vmatprep.subr.mxu0 %v114
  %418 = vmatpush1.msra.mxu0 %v113
  %419 = vmatprep.subr.mxu0 %v106
  %420 = vmatpush1.msra.mxu0 %v105
  %421 = vmatprep.subr.mxu0 %v98
  %422 = vmatpush1.msra.mxu0 %v97
  %423 = vmatprep.subr.mxu0 %v90
  %424 = vmatpush1.msra.mxu0 %v89
  %425 = vmatprep.subr.mxu0 %v82
  %426 = vmatpush1.msra.mxu0 %v81
  %427 = vmatprep.subr.mxu0 %v74
  %428 = vmatpush1.msra.mxu0 %v73
  %429 = vmatprep.subr.mxu0 %v66
  %430 = vmatpush1.msra.mxu0 %v65
  %431 = vmatprep.subr.mxu0 %v58
  %432 = vmatpush1.msra.mxu0 %v57
  %433 = vmatprep.subr.mxu0 %v50
  %434 = vmatpush1.msra.mxu0 %v49
  %435 = vmatprep.subr.mxu0 %v42
  %436 = vmatpush1.msra.mxu0 %v41
  %437 = vmatprep.subr.mxu0 %v34
  %438 = vmatpush1.msra.mxu0 %v33
  %439 = vmatprep.subr.mxu0 %v26
  %440 = vmatpush1.msra.mxu0 %v25
  %441 = vmatprep.subr.mxu0 %v18
  %442 = vmatpush1.msra.mxu0 %v17
  %443 = vmatprep.subr.mxu0 %v266
  %444 = vmatpush2.msra.mxu0 %v265
  %445 = vmatprep.subr.mxu0 %v258
  %446 = vmatpush2.msra.mxu0 %v257
  %447 = vmatprep.subr.mxu0 %v250
  %448 = vmatpush2.msra.mxu0 %v249
  %449 = vmatprep.subr.mxu0 %v242
  %450 = vmatpush2.msra.mxu0 %v241
  %451 = vmatprep.subr.mxu0 %v234
  %452 = vmatpush2.msra.mxu0 %v233
  %453 = vmatprep.subr.mxu0 %v226
  %454 = vmatpush2.msra.mxu0 %v225
  %455 = vmatprep.subr.mxu0 %v218
  %456 = vmatpush2.msra.mxu0 %v217
  %457 = vmatprep.subr.mxu0 %v210
  %458 = vmatpush2.msra.mxu0 %v209
  %459 = vmatprep.subr.mxu0 %v202
  %460 = vmatpush2.msra.mxu0 %v201
  %461 = vmatprep.subr.mxu0 %v194
  %462 = vmatpush2.msra.mxu0 %v193
  %463 = vmatprep.subr.mxu0 %v186
  %464 = vmatpush2.msra.mxu0 %v185
  %465 = vmatprep.subr.mxu0 %v178
  %466 = vmatpush2.msra.mxu0 %v177
  %467 = vmatprep.subr.mxu0 %v170
  %468 = vmatpush2.msra.mxu0 %v169
  %469 = vmatprep.subr.mxu0 %v162
  %470 = vmatpush2.msra.mxu0 %v161
  %471 = vmatprep.subr.mxu0 %v154
  %472 = vmatpush2.msra.mxu0 %v153
  %473 = vmatprep.subr.mxu0 %v146
  %474 = vmatpush2.msra.mxu0 %v145
  %475 = vmatprep.mubr.f32.mxu0 %v12
  %476 = vmatmul.mubr.f32.gmra.mxu0 %v11
  %v477 = vpop.f32.mrf.mxu0
  %v478 = vadd.f32 0.0, %v477
  %v479 = vpop.f32.mrf.mxu0
  %v480 = vadd.f32 0.0, %v479
  %481 = vdwg.mxu0
  %482 = vmatprep.subr.mxu0 %v140
  %483 = vmatpush1.msra.mxu0 %v139
  %484 = vmatprep.subr.mxu0 %v132
  %485 = vmatpush1.msra.mxu0 %v131
  %486 = vmatprep.subr.mxu0 %v124
  %487 = vmatpush1.msra.mxu0 %v123
  %488 = vmatprep.subr.mxu0 %v116
  %489 = vmatpush1.msra.mxu0 %v115
  %490 = vmatprep.subr.mxu0 %v108
  %491 = vmatpush1.msra.mxu0 %v107
  %492 = vmatprep.subr.mxu0 %v100
  %493 = vmatpush1.msra.mxu0 %v99
  %494 = vmatprep.subr.mxu0 %v92
  %495 = vmatpush1.msra.mxu0 %v91
  %496 = vmatprep.subr.mxu0 %v84
  %497 = vmatpush1.msra.mxu0 %v83
  %498 = vmatprep.subr.mxu0 %v76
  %499 = vmatpush1.msra.mxu0 %v75
  %500 = vmatprep.subr.mxu0 %v68
  %501 = vmatpush1.msra.mxu0 %v67
  %502 = vmatprep.subr.mxu0 %v60
  %503 = vmatpush1.msra.mxu0 %v59
  %504 = vmatprep.subr.mxu0 %v52
  %505 = vmatpush1.msra.mxu0 %v51
  %506 = vmatprep.subr.mxu0 %v44
  %507 = vmatpush1.msra.mxu0 %v43
  %508 = vmatprep.subr.mxu0 %v36
  %509 = vmatpush1.msra.mxu0 %v35
  %510 = vmatprep.subr.mxu0 %v28
  %511 = vmatpush1.msra.mxu0 %v27
  %512 = vmatprep.subr.mxu0 %v20
  %513 = vmatpush1.msra.mxu0 %v19
  %514 = vmatprep.subr.mxu0 %v268
  %515 = vmatpush2.msra.mxu0 %v267
  %516 = vmatprep.subr.mxu0 %v260
  %517 = vmatpush2.msra.mxu0 %v259
  %518 = vmatprep.subr.mxu0 %v252
  %519 = vmatpush2.msra.mxu0 %v251
  %520 = vmatprep.subr.mxu0 %v244
  %521 = vmatpush2.msra.mxu0 %v243
  %522 = vmatprep.subr.mxu0 %v236
  %523 = vmatpush2.msra.mxu0 %v235
  %524 = vmatprep.subr.mxu0 %v228
  %525 = vmatpush2.msra.mxu0 %v227
  %526 = vmatprep.subr.mxu0 %v220
  %527 = vmatpush2.msra.mxu0 %v219
  %528 = vmatprep.subr.mxu0 %v212
  %529 = vmatpush2.msra.mxu0 %v211
  %530 = vmatprep.subr.mxu0 %v204
  %531 = vmatpush2.msra.mxu0 %v203
  %532 = vmatprep.subr.mxu0 %v196
  %533 = vmatpush2.msra.mxu0 %v195
  %534 = vmatprep.subr.mxu0 %v188
  %535 = vmatpush2.msra.mxu0 %v187
  %536 = vmatprep.subr.mxu0 %v180
  %537 = vmatpush2.msra.mxu0 %v179
  %538 = vmatprep.subr.mxu0 %v172
  %539 = vmatpush2.msra.mxu0 %v171
  %540 = vmatprep.subr.mxu0 %v164
  %541 = vmatpush2.msra.mxu0 %v163
  %542 = vmatprep.subr.mxu0 %v156
  %543 = vmatpush2.msra.mxu0 %v155
  %544 = vmatprep.subr.mxu0 %v148
  %545 = vmatpush2.msra.mxu0 %v147
  %546 = vmatprep.mubr.f32.mxu0 %v12
  %547 = vmatmul.mubr.f32.gmra.mxu0 %v11
  %v548 = vpop.f32.mrf.mxu0
  %v549 = vadd.f32 0.0, %v548
  %v550 = vpop.f32.mrf.mxu0
  %v551 = vadd.f32 0.0, %v550
  %552 = vdwg.mxu0
  %553 = vst [vmem:[%s2] sm:$0xff] %v336
  %554 = vst [vmem:[%s2 + $0x8] sm:$0xff] %v338
  %555 = vst [vmem:[%s2 + $0x10] sm:$0xff] %v407
  %556 = vst [vmem:[%s2 + $0x18] sm:$0xff] %v409
  %557 = vst [vmem:[%s2 + $0x20] sm:$0xff] %v478
  %558 = vst [vmem:[%s2 + $0x28] sm:$0xff] %v480
  %559 = vst [vmem:[%s2 + $0x30] sm:$0xff] %v549
  %560 = vst [vmem:[%s2 + $0x38] sm:$0xff] %v551
  // Predicated region
  $region10: #{upsample_bilinear2d.1} parent=0 // pred_check
    _
  $region11: #{upsample_bilinear2d.1} parent=0 // pred_check_branch
    %562 = sbr.rel (0) target = $region13
  $region12: #{upsample_bilinear2d.1} parent=0 // pred_region
    _
  $region13: #{upsample_bilinear2d.1} parent=0 // pred_fallthru
    _
  // Predicated region
  $region14: #{upsample_bilinear2d.1} parent=0 // pred_check
    _
  $region15: #{upsample_bilinear2d.1} parent=0 // pred_check_branch
    %564 = sbr.rel (0) target = $region17
  $region16: #{upsample_bilinear2d.1} parent=0 // pred_region
    _
  $region17: #{upsample_bilinear2d.1} parent=0 // pred_fallthru
    _

</llo_original>
